<compile_context>
chip_gen: v5e
topology: v5e:2x2
jax: 0.10.0
libtpu: 0.0.40
codegen_flags: <defaults>
</compile_context>

<pallas_src>
import functools
import math

import jax
import jax.numpy as jnp
import numpy as np
from jax import lax
from jax.experimental import pallas as pl
from jax.experimental.pallas import tpu as pltpu

# dot_general dimension_numbers:
_DN_NT = (((1,), (1,)), ((), ()))  # (m, k) x (n, k) -> (m, n)  (contract last dims)
_DN_NN = (((1,), (0,)), ((), ()))  # (m, k) x (k, n) -> (m, n)  (plain matmul)

_WEIGHT_SINGLE_BUFFER_BYTES = 8 * 1024 * 1024


def _attn_defaults():
    """(block_l, vmem_limit_bytes) per TPU generation."""
    try:
        kind = jax.devices()[0].device_kind.lower()
    except Exception:
        kind = ""
    if "v7" in kind or "7x" in kind:
        # v7x: 64 MiB VMEM per TensorCore -> smaller query tile, tighter limit.
        return 256, 48 * 1024 * 1024
    # v5e / v6e (128 MiB physical VMEM): biggest tile that double-buffers cleanly.
    return 512, 64 * 1024 * 1024


def _resident_weight_spec(d_in, d_out, nbytes):
    # Weight block index is constant across the grid; for big weights single-buffer
    # it (no pipelining loss, halves its VMEM footprint -- matters on v7x).
    if nbytes >= _WEIGHT_SINGLE_BUFFER_BYTES:
        return pl.BlockSpec((d_in, d_out), lambda i: (0, 0),
                            pipeline_mode=pl.Buffered(1))
    return pl.BlockSpec((d_in, d_out), lambda i: (0, 0))


# ---------------------------------------------------------------------------
# Kernel 1: linear projection  y = x @ W_t + b   (W_t already (d_in, d_out))
# ---------------------------------------------------------------------------
def _linear_kernel(x_ref, w_ref, b_ref, o_ref):
    acc = jnp.dot(x_ref[...], w_ref[...], preferred_element_type=jnp.float32)
    o_ref[...] = (acc + b_ref[...]).astype(o_ref.dtype)


def linear(x2d, w_t, b, *, out_dtype, block_rows=512, vmem_limit=64 * 1024 * 1024):
    n, d_in = x2d.shape
    d_out = w_t.shape[1]
    tm = min(block_rows, n)
    return pl.pallas_call(
        _linear_kernel,
        out_shape=jax.ShapeDtypeStruct((n, d_out), out_dtype),
        grid=(pl.cdiv(n, tm),),
        in_specs=[
            pl.BlockSpec((tm, d_in), lambda i: (i, 0)),          # streamed rows
            _resident_weight_spec(d_in, d_out, w_t.size * w_t.dtype.itemsize),
            pl.BlockSpec((1, d_out), lambda i: (0, 0)),          # bias resident
        ],
        out_specs=pl.BlockSpec((tm, d_out), lambda i: (i, 0)),
        compiler_params=pltpu.CompilerParams(
            dimension_semantics=("parallel",),
            vmem_limit_bytes=vmem_limit),
    )(x2d, w_t, b.reshape(1, d_out))


# ---------------------------------------------------------------------------
# Kernel 2: attention, one (batch, L-tile, head) per grid step
# ---------------------------------------------------------------------------
def _attn_kernel(q_ref, k_ref, v_ref, o_ref, a_ref, *, scale):
    # q: (tl, Dk) bf16 (this head's query tile, sliced by the BlockSpec DMA)
    # k: (H, T, Dk) bf16, v: (H, T, Dv) bf16 (all heads, DMA'd once per batch)
    # o: (tl, Dv), a: (tl, T)
    h = pl.program_id(2)
    kh = k_ref[h]                       # dynamic leading-axis index: cheap VMEM read
    vh = v_ref[h]
    s = lax.dot_general(q_ref[...], kh, _DN_NT,
                        preferred_element_type=jnp.float32) * scale
    # TODO(synk): optional boolean `mask` (masked_fill with -inf) not implemented;
    # only the mask=None path of the PyTorch module is covered.
    m = jnp.max(s, axis=-1, keepdims=True)
    e = jnp.exp(s - m)
    p = e * pl.reciprocal(jnp.sum(e, axis=-1, keepdims=True), approx=True)
    a_ref[...] = p.astype(a_ref.dtype)
    o_ref[...] = lax.dot_general(p.astype(v_ref.dtype), vh, _DN_NN,
                                 preferred_element_type=jnp.float32).astype(o_ref.dtype)


def attention(qh, kh, vh, *, out_dtype, attn_dtype, block_l, vmem_limit):
    # qh: (B, H, L, Dk), kh: (B, H, T, Dk), vh: (B, H, T, Dv)
    B, H, L, Dk = qh.shape
    T = kh.shape[2]
    Dv = vh.shape[3]
    tl = min(block_l, L)
    kern = functools.partial(_attn_kernel, scale=1.0 / math.sqrt(Dk))
    return pl.pallas_call(
        kern,
        out_shape=(
            jax.ShapeDtypeStruct((B, H, L, Dv), out_dtype),     # per-head context
            jax.ShapeDtypeStruct((H, B, L, T), attn_dtype),     # attention map
        ),
        grid=(B, pl.cdiv(L, tl), H),
        in_specs=[
            # Per-(L-tile, head) query block: DMA does the head slicing.
            pl.BlockSpec((None, None, tl, Dk), lambda b, l, h: (b, h, l, 0)),
            # K/V: all heads for this batch; index invariant over l,h -> one DMA per batch.
            pl.BlockSpec((None, H, T, Dk), lambda b, l, h: (b, 0, 0, 0)),
            pl.BlockSpec((None, H, T, Dv), lambda b, l, h: (b, 0, 0, 0)),
        ],
        out_specs=(
            pl.BlockSpec((None, None, tl, Dv), lambda b, l, h: (b, h, l, 0)),
            pl.BlockSpec((None, None, tl, T), lambda b, l, h: (h, b, l, 0)),
        ),
        compiler_params=pltpu.CompilerParams(
            dimension_semantics=("parallel", "parallel", "arbitrary"),
            vmem_limit_bytes=vmem_limit),
    )(qh, kh, vh)


# ---------------------------------------------------------------------------
# Kernel 3: output projection + residual add + LayerNorm (fused, row-tiled)
# ---------------------------------------------------------------------------
def _fc_ln_kernel(x_ref, res_ref, w_ref, b_ref, g_ref, beta_ref, o_ref, *, eps):
    y = jnp.dot(x_ref[...], w_ref[...], preferred_element_type=jnp.float32)
    # TODO(synk): dropout(p=0.1) treated as eval-mode identity (no RNG drop).
    y = y + b_ref[...] + res_ref[...]
    mu = jnp.mean(y, axis=-1, keepdims=True)
    var = jnp.mean((y - mu) ** 2, axis=-1, keepdims=True)
    yhat = (y - mu) * lax.rsqrt(var + eps)
    o_ref[...] = (yhat * g_ref[...] + beta_ref[...]).astype(o_ref.dtype)


def fc_layernorm(x2d, res2d, w_t, b, gamma, beta, *, eps=1e-5, block_rows=512,
                 vmem_limit=64 * 1024 * 1024):
    n, d_in = x2d.shape
    d_model = w_t.shape[1]
    tm = min(block_rows, n)
    kern = functools.partial(_fc_ln_kernel, eps=eps)
    return pl.pallas_call(
        kern,
        out_shape=jax.ShapeDtypeStruct((n, d_model), jnp.float32),
        grid=(pl.cdiv(n, tm),),
        in_specs=[
            pl.BlockSpec((tm, d_in), lambda i: (i, 0)),
            pl.BlockSpec((tm, d_model), lambda i: (i, 0)),
            _resident_weight_spec(d_in, d_model, w_t.size * w_t.dtype.itemsize),
            pl.BlockSpec((1, d_model), lambda i: (0, 0)),
            pl.BlockSpec((1, d_model), lambda i: (0, 0)),
            pl.BlockSpec((1, d_model), lambda i: (0, 0)),
        ],
        out_specs=pl.BlockSpec((tm, d_model), lambda i: (i, 0)),
        compiler_params=pltpu.CompilerParams(
            dimension_semantics=("parallel",),
            vmem_limit_bytes=vmem_limit),
    )(x2d, res2d, w_t, b.reshape(1, d_model),
      gamma.reshape(1, d_model), beta.reshape(1, d_model))


# ---------------------------------------------------------------------------
# Full forward
# ---------------------------------------------------------------------------
def multi_head_attention(params, q, k, v, *, compute_dtype=jnp.bfloat16,
                         attn_dtype=jnp.bfloat16):
    H, Dk, Dv = params["n_head"], params["d_k"], params["d_v"]
    B, L, Dm = q.shape
    T = k.shape[1]
    cd = compute_dtype
    block_l, vmem_limit = _attn_defaults()

    residual = q  # residual path stays f32

    # Pre-transpose weights once (one-time XLA op) so the resident kernel weight is
    # already in MXU-native (K, N) orientation.
    wq_t = params["w_qs_w"].T.astype(cd)
    wk_t = params["w_ks_w"].T.astype(cd)
    wv_t = params["w_vs_w"].T.astype(cd)

    if q is k and k is v:
        # Self-attention: fuse the three projections (activation read once from HBM,
        # one kernel launch, 3x wider MXU N).
        w_cat = jnp.concatenate([wq_t, wk_t, wv_t], axis=1)
        b_cat = jnp.concatenate([params["w_qs_b"], params["w_ks_b"], params["w_vs_b"]])
        qkv = linear(q.reshape(B * L, Dm).astype(cd), w_cat, b_cat,
                     out_dtype=cd, vmem_limit=vmem_limit)
        qp = qkv[:, :H * Dk]
        kp = qkv[:, H * Dk:2 * H * Dk]
        vp = qkv[:, 2 * H * Dk:]
    else:
        qp = linear(q.reshape(B * L, Dm).astype(cd), wq_t, params["w_qs_b"],
                    out_dtype=cd, vmem_limit=vmem_limit)
        kp = linear(k.reshape(B * T, Dm).astype(cd), wk_t, params["w_ks_b"],
                    out_dtype=cd, vmem_limit=vmem_limit)
        vp = linear(v.reshape(B * T, Dm).astype(cd), wv_t, params["w_vs_b"],
                    out_dtype=cd, vmem_limit=vmem_limit)

    # 'b l (head d) -> b head l d' as one-time XLA transposes (small next to the
    # attention-map write); inside the kernel every block is then a clean aligned
    # rectangle and head selection happens in the BlockSpec / leading-axis index.
    qh = qp.reshape(B, L, H, Dk).transpose(0, 2, 1, 3)
    kh = kp.reshape(B, T, H, Dk).transpose(0, 2, 1, 3)
    vh = vp.reshape(B, T, H, Dv).transpose(0, 2, 1, 3)

    ctx, attn = attention(qh, kh, vh, out_dtype=cd, attn_dtype=attn_dtype,
                          block_l=block_l, vmem_limit=vmem_limit)

    # 'b head l v -> b l (head v)'
    ctx2d = ctx.transpose(0, 2, 1, 3).reshape(B * L, H * Dv)

    out = fc_layernorm(ctx2d,
                       residual.reshape(B * L, Dm).astype(jnp.float32),
                       params["fc_w"].T.astype(cd), params["fc_b"],
                       params["ln_g"], params["ln_b"],
                       vmem_limit=vmem_limit)
    return out.reshape(B, L, Dm), attn


# ---------------------------------------------------------------------------
# Pure-JAX reference (mirrors the mixed-precision policy: bf16 matmul operands,
# f32 accumulation, f32 softmax / LayerNorm statistics).
# ---------------------------------------------------------------------------
def reference(params, q, k, v, *, compute_dtype=jnp.bfloat16):
    H, Dk, Dv = params["n_head"], params["d_k"], params["d_v"]
    B, L, Dm = q.shape
    T = k.shape[1]
    cd = compute_dtype
    f32 = jnp.float32

    def lin(x, w, b):
        y = jnp.dot(x.astype(cd), w.astype(cd).T, preferred_element_type=f32) + b
        return y.astype(cd)

    qp = lin(q, params["w_qs_w"], params["w_qs_b"]).reshape(B, L, H, Dk).transpose(2, 0, 1, 3)
    kp = lin(k, params["w_ks_w"], params["w_ks_b"]).reshape(B, T, H, Dk).transpose(2, 0, 1, 3)
    vp = lin(v, params["w_vs_w"], params["w_vs_b"]).reshape(B, T, H, Dv).transpose(2, 0, 1, 3)

    s = jnp.einsum("hblk,hbtk->hblt", qp, kp, preferred_element_type=f32) / np.sqrt(Dk)
    attn = jax.nn.softmax(s, axis=3)
    ctx = jnp.einsum("hblt,hbtv->hblv", attn.astype(cd), vp, preferred_element_type=f32)
    ctx = ctx.transpose(1, 2, 0, 3).reshape(B, L, H * Dv).astype(cd)

    y = jnp.dot(ctx, params["fc_w"].astype(cd).T, preferred_element_type=f32)
    y = y + params["fc_b"] + q
    mu = y.mean(-1, keepdims=True)
    var = ((y - mu) ** 2).mean(-1, keepdims=True)
    y = (y - mu) / jnp.sqrt(var + 1e-5) * params["ln_g"] + params["ln_b"]
    return y, attn


if __name__ == "__main__":
    # Small, module-consistent shapes.
    n_head, d_model, d_k, d_v = 4, 32, 8, 8
    B, L, T = 2, 8, 8

    key = jax.random.PRNGKey(0)
    ks = jax.random.split(key, 12)

    std_qk = float(np.sqrt(2.0 / (d_model + d_k)))
    std_v = float(np.sqrt(2.0 / (d_model + d_v)))
    std_fc = float(np.sqrt(2.0 / (n_head * d_v + d_model)))  # xavier_normal
    bnd = 1.0 / float(np.sqrt(d_model))
    bnd_fc = 1.0 / float(np.sqrt(n_head * d_v))

    params = {
        "n_head": n_head,
        "d_k": d_k,
        "d_v": d_v,
        "w_qs_w": std_qk * jax.random.normal(ks[0], (n_head * d_k, d_model), jnp.float32),
        "w_ks_w": std_qk * jax.random.normal(ks[1], (n_head * d_k, d_model), jnp.float32),
        "w_vs_w": std_v * jax.random.normal(ks[2], (n_head * d_v, d_model), jnp.float32),
        "fc_w": std_fc * jax.random.normal(ks[3], (d_model, n_head * d_v), jnp.float32),
        "w_qs_b": jax.random.uniform(ks[4], (n_head * d_k,), jnp.float32, -bnd, bnd),
        "w_ks_b": jax.random.uniform(ks[5], (n_head * d_k,), jnp.float32, -bnd, bnd),
        "w_vs_b": jax.random.uniform(ks[6], (n_head * d_v,), jnp.float32, -bnd, bnd),
        "fc_b": jax.random.uniform(ks[7], (d_model,), jnp.float32, -bnd_fc, bnd_fc),
        "ln_g": jnp.ones((d_model,), jnp.float32),
        "ln_b": jnp.zeros((d_model,), jnp.float32),
    }

    q = jax.random.normal(ks[8], (B, L, d_model), jnp.float32)
    k = jax.random.normal(ks[9], (B, T, d_model), jnp.float32)
    v = jax.random.normal(ks[10], (B, T, d_model), jnp.float32)

    # Cross-attention path (separate projections).
    out, attn = multi_head_attention(params, q, k, v)
    out = jax.block_until_ready(out)
    attn = jax.block_until_ready(attn)
    ref_out, ref_attn = reference(params, q, k, v)
    assert out.shape == (B, L, d_model) and attn.shape == (n_head, B, L, T)
    # bf16 matmul operands, bf16 attention map, approx reciprocal -> loosened tolerances.
    np.testing.assert_allclose(np.asarray(out, dtype=np.float32),
                               np.asarray(ref_out, dtype=np.float32), rtol=2e-2, atol=3e-2)
    np.testing.assert_allclose(np.asarray(attn.astype(jnp.float32)),
                               np.asarray(ref_attn, dtype=np.float32), rtol=2e-2, atol=2e-2)

    # Self-attention path (fused QKV projection).
    out2, attn2 = multi_head_attention(params, q, q, q)
    out2 = jax.block_until_ready(out2)
    attn2 = jax.block_until_ready(attn2)
    ref_out2, ref_attn2 = reference(params, q, q, q)
    np.testing.assert_allclose(np.asarray(out2, dtype=np.float32),
                               np.asarray(ref_out2, dtype=np.float32), rtol=2e-2, atol=3e-2)
    np.testing.assert_allclose(np.asarray(attn2.astype(jnp.float32)),
                               np.asarray(ref_attn2, dtype=np.float32), rtol=2e-2, atol=2e-2)

    print("KERNEL_OK")
</pallas_src>

<mosaic_0001>
module attributes {stable_mosaic.version = 11 : i64} {
  func.func @_linear_kernel(%arg0: i32, %arg1: memref<16x32xbf16, #tpu.memory_space<vmem>>, %arg2: memref<32x32xbf16, #tpu.memory_space<vmem>>, %arg3: memref<1x32xf32, #tpu.memory_space<vmem>>, %arg4: memref<16x32xbf16, #tpu.memory_space<vmem>>) attributes {dimension_semantics = [#tpu.dimension_semantics<parallel>], iteration_bounds = array<i64: 1>, scalar_prefetch = 0 : i64, scratch_operands = 0 : i64, tpu.core_type = #tpu.core_type<tc>, window_params = [{transform_indices = @transform_0, window_bounds = array<i64: 16, 32>}, {pipeline_mode = #tpu.pipeline_mode<synchronous>, transform_indices = @transform_1, window_bounds = array<i64: 32, 32>}, {pipeline_mode = #tpu.pipeline_mode<synchronous>, transform_indices = @transform_2, window_bounds = array<i64: 1, 32>}, {transform_indices = @transform_3, window_bounds = array<i64: 16, 32>}]} {
    %c0 = arith.constant 0 : index
    %c0_0 = arith.constant 0 : index
    %0 = vector.load %arg1[%c0, %c0_0] : memref<16x32xbf16, #tpu.memory_space<vmem>>, vector<16x32xbf16>
    %c0_1 = arith.constant 0 : index
    %c0_2 = arith.constant 0 : index
    %1 = vector.load %arg2[%c0_1, %c0_2] : memref<32x32xbf16, #tpu.memory_space<vmem>>, vector<32x32xbf16>
    %cst = arith.constant dense<0.000000e+00> : vector<16x32xf32>
    %2 = tpu.matmul %0, %1, %cst {dimension_numbers = #tpu.dot_dimension_numbers<[1], [0], [0], [1], [0, 0, 1, 1], [], []>} : vector<16x32xbf16>, vector<32x32xbf16>, vector<16x32xf32> -> vector<16x32xf32>
    %c0_3 = arith.constant 0 : index
    %c0_4 = arith.constant 0 : index
    %3 = vector.load %arg3[%c0_3, %c0_4] : memref<1x32xf32, #tpu.memory_space<vmem>>, vector<1x32xf32>
    %4 = vector.broadcast %3 : vector<1x32xf32> to vector<16x32xf32>
    %5 = arith.addf %2, %4 : vector<16x32xf32>
    %6 = arith.truncf %5 : vector<16x32xf32> to vector<16x32xbf16>
    %c0_5 = arith.constant 0 : index
    %c0_6 = arith.constant 0 : index
    %7 = vector.load %arg4[%c0_5, %c0_6] : memref<16x32xbf16, #tpu.memory_space<vmem>>, vector<16x32xbf16>
    tpu.vector_store %arg4[%c0_5, %c0_6], %6 {strides = array<i32>} : memref<16x32xbf16, #tpu.memory_space<vmem>>, vector<16x32xbf16>,
    return
  }
  func.func @transform_0(%arg0: i32) -> (i32, i32) {
    %c0_i32 = arith.constant 0 : i32
    %c0_i32_0 = arith.constant 0 : i32
    return %arg0, %c0_i32 : i32, i32
  }
  func.func @transform_1(%arg0: i32) -> (i32, i32) {
    %c0_i32 = arith.constant 0 : i32
    %c0_i32_0 = arith.constant 0 : i32
    %c0_i32_1 = arith.constant 0 : i32
    return %c0_i32, %c0_i32_0 : i32, i32
  }
  func.func @transform_2(%arg0: i32) -> (i32, i32) {
    %c0_i32 = arith.constant 0 : i32
    %c0_i32_0 = arith.constant 0 : i32
    %c0_i32_1 = arith.constant 0 : i32
    return %c0_i32, %c0_i32_0 : i32, i32
  }
  func.func @transform_3(%arg0: i32) -> (i32, i32) {
    %c0_i32 = arith.constant 0 : i32
    %c0_i32_0 = arith.constant 0 : i32
    return %arg0, %c0_i32 : i32, i32
  }
}

</mosaic_0001>

<llo_original>
// kernel: tpu_custom_call.1
$region0: #{tpu_custom_call.1}
  #allocation0 [shape = 'u32[]', space=smem, size = 0x4, offset = 0x4, fixed_abs, tag = 'smem constant byte address 0x4 - core index']
  #allocation1 [shape = 'u32[72,128]{1,0:T(1,128)}', space=vmem, size = 0x9000, scoped, tag = 'internal scratch']
  %s0 = inlined_call_operand.hbm [shape: bf16[16,32], index: 0, kind: input, shape index: {}]
  %s1 = inlined_call_operand.hbm [shape: bf16[32,32], index: 1, kind: input, shape index: {}]
  %s2 = inlined_call_operand.vmem [shape: f32[1,32], index: 2, kind: input, shape index: {}]
  %s3 = inlined_call_operand.hbm [shape: bf16[16,32], index: 3, kind: output, shape index: {}]
  %s4 = sld [smem:[#allocation0]]
  $region30: #{tpu_custom_call.1} parent=0
    _
  %s6 = ssub.s32 1, %s4
  %s7 = scalar_select 0, %s6, %s4
  $region1: #{tpu_custom_call.1} parent=0
    #allocation2 [shape = 'u8[4096]{0}', space=vmem, size = 0x1000, scoped, tag = 'input window, operand 0, single buffered']
    #allocation3 [shape = 's32[1]{0}', space=sflag, size = 0x4, scoped, tag = 'scoped memory for tpu_custom_call.1']
    #allocation4 [shape = 's32[1]{0}', space=sflag, size = 0x4, scoped, tag = 'scoped memory for tpu_custom_call.1']
    #allocation5 [shape = 'u8[8192]{0}', space=vmem, size = 0x2000, scoped, tag = 'input window, operand 1, single buffered']
    #allocation6 [shape = 's32[1]{0}', space=sflag, size = 0x4, scoped, tag = 'scoped memory for tpu_custom_call.1']
    #allocation7 [shape = 'u8[4096]{0}', space=vmem, size = 0x1000, scoped, tag = 'output window, operand 0, single buffered']
    %8 = vsyncpa [#allocation3], 0
    %9 = vsyncpa [#allocation6], 0
    %10 = vsyncpa [#allocation4], 0
    // Predicated region
    $region2: #{tpu_custom_call.1} parent=1 // pred_check
      _
    $region3: #{tpu_custom_call.1} parent=1 // pred_check_branch
      %12 = sbr.rel (0) target = $region5
    $region4: #{tpu_custom_call.1} parent=1 // pred_region
      %14 = vsyncadd [#allocation3], 0
      %s15 = sshll.u32 %s0, 4
      %s16 = int_to_ptr.hbm [resolvable:$true] %s15
      %s17 = sshll.u32 [#allocation2], 4
      %s18 = int_to_ptr.vmem [resolvable:$true] %s17
      %23 = dma.hbm_to_vmem [thread:$0]  %s16, 128, %s18, [#allocation3], 64, 64, 4
    $region5: #{tpu_custom_call.1} parent=1 // pred_fallthru
      _
    // Predicated region
    $region6: #{tpu_custom_call.1} parent=1 // pred_check
      _
    $region7: #{tpu_custom_call.1} parent=1 // pred_check_branch
      %25 = sbr.rel (0) target = $region9
    $region8: #{tpu_custom_call.1} parent=1 // pred_region
      %27 = vsyncadd [#allocation6], 0
      %s28 = sshll.u32 %s1, 4
      %s29 = int_to_ptr.hbm [resolvable:$true] %s28
      %s30 = sshll.u32 [#allocation5], 4
      %s31 = int_to_ptr.vmem [resolvable:$true] %s30
      %36 = dma.hbm_to_vmem [thread:$0]  %s29, 256, %s31, [#allocation6], 64, 64, 4
    $region9: #{tpu_custom_call.1} parent=1 // pred_fallthru
      _
    // Predicated region
    $region10: #{tpu_custom_call.1} parent=1 // pred_check
      _
    $region11: #{tpu_custom_call.1} parent=1 // pred_check_branch
      %38 = sbr.rel (0) target = $region13
    $region12: #{tpu_custom_call.1} parent=1 // pred_region
      _
    $region13: #{tpu_custom_call.1} parent=1 // pred_fallthru
      _
    // Predicated region
    $region14: #{tpu_custom_call.1} parent=1 // pred_check
      _
    $region15: #{tpu_custom_call.1} parent=1 // pred_check_branch
      %40 = sbr.rel (0) target = $region17
    $region16: #{tpu_custom_call.1} parent=1 // pred_region
      %42 = dma.done [#allocation3], 128
    $region17: #{tpu_custom_call.1} parent=1 // pred_fallthru
      _
    // Predicated region
    $region18: #{tpu_custom_call.1} parent=1 // pred_check
      _
    $region19: #{tpu_custom_call.1} parent=1 // pred_check_branch
      %44 = sbr.rel (0) target = $region21
    $region20: #{tpu_custom_call.1} parent=1 // pred_region
      %46 = dma.done [#allocation6], 256
    $region21: #{tpu_custom_call.1} parent=1 // pred_fallthru
      _
    %v48 = vld [vmem:[#allocation2] sm:$0xf]
    %v49 = vld [vmem:[#allocation2 + $0x4] sm:$0xf]
    %v50 = vld [vmem:[#allocation5] sm:$0xf]
    %v51 = vld [vmem:[#allocation5 + $0x4] sm:$0xf]
    %v52 = vld [vmem:[#allocation5 + $0x8] sm:$0xf]
    %v53 = vld [vmem:[#allocation5 + $0xc] sm:$0xf]
    %v54 = vld [vmem:[%s2] sm:$0x1]
    %v56 = vperm.slane %v54, 0
    %v60 = vunpack.c.l.b16 %v48
    %v61 = vunpack.c.l.b16 %v49
    %v62 = vpack.c.b16 %v61, %v60
    %v67 = vunpack.c.l.b16 %v50
    %v68 = vunpack.c.l.b16 %v51
    %v69 = vunpack.c.l.b16 %v52
    %v70 = vunpack.c.l.b16 %v53
    %v71 = vpack.c.b16 %v68, %v67
    %v72 = vpack.c.b16 %v70, %v69
    %vm75 = vcmask 261120
    %v77 = vsel %vm75, %v62, 0
    %79 = vmatpush.bf16.msra.mxu0 0
    %80 = vmatpush.bf16.msra.mxu0 0
    %81 = vmatpush.bf16.msra.mxu0 0
    %82 = vmatpush.bf16.msra.mxu0 0
    %83 = vmatpush.bf16.msra.mxu0 0
    %84 = vmatpush.bf16.msra.mxu0 0
    %85 = vmatpush.bf16.msra.mxu0 %v72
    %86 = vmatpush.bf16.msra.mxu0 %v71
    %87 = vmatmul.bf16.gmra.mxu0 %v77
    %v88 = vpop.f32.mrf.mxu0
    %v89 = vadd.f32 %v56, %v88
    %v90 = vpop.f32.mrf.mxu0
    %v91 = vadd.f32 %v56, %v90
    %92 = vdwg.mxu0
    %v93 = vpack.c.bf16 %v89, %v89
    %v94 = vpack.c.bf16 %v91, %v91
    %vm95 = vcmask 257024
    %96 = vst.msk [vmem:[#allocation7] sm:$0xf] %vm95, %v93
    %97 = vst.msk [vmem:[#allocation7 + $0x4] sm:$0xf] %vm95, %v94
    // Predicated region
    $region22: #{tpu_custom_call.1} parent=1 // pred_check
      _
    $region23: #{tpu_custom_call.1} parent=1 // pred_check_branch
      %99 = sbr.rel (0) target = $region25
    $region24: #{tpu_custom_call.1} parent=1 // pred_region
      %101 = vsyncadd [#allocation4], 0
      %s102 = sshll.u32 [#allocation7], 4
      %s103 = int_to_ptr.vmem [resolvable:$true] %s102
      %s104 = sshll.u32 %s3, 4
      %s105 = int_to_ptr.hbm [resolvable:$true] %s104
      %110 = dma.vmem_to_hbm [thread:$0]  %s103, 128, %s105, [#allocation4], 64, 64, 4
    $region25: #{tpu_custom_call.1} parent=1 // pred_fallthru
      _
    // Predicated region
    $region26: #{tpu_custom_call.1} parent=1 // pred_check
      _
    $region27: #{tpu_custom_call.1} parent=1 // pred_check_branch
      %112 = sbr.rel (0) target = $region29
    $region28: #{tpu_custom_call.1} parent=1 // pred_region
      %114 = dma.done [#allocation4], 128
    $region29: #{tpu_custom_call.1} parent=1 // pred_fallthru
      _
    %115 = vsyncpa [#allocation3], 1
    %116 = vsyncpa [#allocation6], 1
    %117 = vsyncpa [#allocation4], 1

</llo_original>
